<compile_context>
chip_gen: v5e
topology: v5e:2x2
jax: 0.10.0
libtpu: 0.0.40
codegen_flags: <defaults>
</compile_context>

<pallas_src>
import math
import functools

import jax
import jax.numpy as jnp
from jax.experimental import pallas as pl
from jax.experimental.pallas import tpu as pltpu


def build_sinusoidal_pe(seq_len: int, d_model: int) -> jnp.ndarray:
    """Deterministic PE buffer, shape (1, seq_len, d_model), float32."""
    position = jnp.arange(seq_len, dtype=jnp.float32)[:, None]          # (S, 1)
    div_term = jnp.exp(
        jnp.arange(0, d_model, 2, dtype=jnp.float32)
        * (-math.log(10000.0) / d_model)
    )                                                                    # (D/2,)
    angles = position * div_term                                         # (S, D/2)
    pe = jnp.zeros((seq_len, d_model), jnp.float32)
    pe = pe.at[:, 0::2].set(jnp.sin(angles))
    pe = pe.at[:, 1::2].set(jnp.cos(angles))
    return pe[None, :, :]                                                # (1, S, D)


def _pe_add_kernel(x_ref, pe_ref, o_ref):
    """y = x + pe (eval mode, no dropout)."""
    x = x_ref[...].astype(jnp.float32)                # (b_tile, r_tile, L)
    pe = pe_ref[...].astype(jnp.float32)              # (r_tile, L)
    o_ref[...] = (x + pe[None, :, :]).astype(o_ref.dtype)


def _pe_add_dropout_kernel(x_ref, pe_ref, bits_ref, o_ref, *, keep_prob: float):
    """y = dropout(x + pe, p) with precomputed uniform uint32 bits."""
    x = x_ref[...].astype(jnp.float32)                # (b_tile, r_tile, L)
    pe = pe_ref[...].astype(jnp.float32)              # (r_tile, L)
    y = x + pe[None, :, :]
    # keep element iff uniform-u32 <= keep_prob * (2^32 - 1)
    # (inclusive bound -> ~2^-32 keep-probability bias; negligible)
    thresh = jnp.uint32(int(keep_prob * 4294967295.0))
    keep = bits_ref[...] <= thresh
    y = jnp.where(keep, y * (1.0 / keep_prob), 0.0)
    o_ref[...] = y.astype(o_ref.dtype)


def positional_encoding_forward(x, pe, *, dropout_p: float, rng_key=None):
    """x: (B, S, D); pe: (1, S_full, D) with S <= S_full."""
    B, S, D = x.shape
    pe_sl = pe[0, :S, :].astype(x.dtype)              # mirror self.pe[:, :x.shape[1], :]

    # p == 1.0 would make 1/keep_prob infinite; PyTorch dropout(p=1) zeroes everything.
    if dropout_p >= 1.0:
        return jnp.zeros_like(x)

    # --- Pick a lane-dense 2D view (last dim = multiple of 128 lanes). ---
    if D % 128 == 0:
        R, L = S, D
    elif (S * D) % 128 == 0:
        R, L = (S * D) // 128, 128                    # free row-major regrouping
    else:
        # TODO(synk): feature size not 128-aligned -> masked partial stores.
        R, L = S, D

    x2 = x.reshape(B, R, L)
    pe2 = pe_sl.reshape(R, L)

    # --- Tile rows to ~2 MiB of f32 per x tile (fits double-buffered VMEM on
    #     v5e 16 MiB / v6e 32 MiB / v7x 32 MiB scoped budgets with headroom). ---
    MAX_TILE_ELEMS = 512 * 1024
    if B * R * L <= MAX_TILE_ELEMS:
        b_tile, r_tile = B, R                          # whole problem in one block
    else:
        b_tile = 1
        r_tile = min(R, max(8, (MAX_TILE_ELEMS // max(L, 1)) // 8 * 8))

    # rows outer, batch inner: PE block index is constant across the inner batch
    # loop, so its tile stays resident (read S*D once instead of B*S*D).
    grid = (pl.cdiv(R, r_tile), pl.cdiv(B, b_tile))

    x_spec = pl.BlockSpec((b_tile, r_tile, L), lambda r, b: (b, r, 0))
    pe_spec = pl.BlockSpec((r_tile, L), lambda r, b: (r, 0))
    out_spec = pl.BlockSpec((b_tile, r_tile, L), lambda r, b: (b, r, 0))

    cparams = pltpu.CompilerParams(
        dimension_semantics=("parallel", "parallel"),
        vmem_limit_bytes=32 * 1024 * 1024,
    )

    if dropout_p > 0.0:
        if rng_key is None:
            rng_key = jax.random.PRNGKey(0)
        keep_prob = 1.0 - dropout_p
        bits = jax.random.bits(rng_key, (B, R, L), dtype=jnp.uint32)
        kernel = functools.partial(_pe_add_dropout_kernel, keep_prob=keep_prob)
        out2 = pl.pallas_call(
            kernel,
            out_shape=jax.ShapeDtypeStruct((B, R, L), x.dtype),
            grid=grid,
            in_specs=[x_spec, pe_spec, x_spec],        # bits share x's blocking
            out_specs=out_spec,
            compiler_params=cparams,
            input_output_aliases={0: 0},               # reuse x's HBM buffer
        )(x2, pe2, bits)
    else:
        out2 = pl.pallas_call(
            _pe_add_kernel,
            out_shape=jax.ShapeDtypeStruct((B, R, L), x.dtype),
            grid=grid,
            in_specs=[x_spec, pe_spec],
            out_specs=out_spec,
            compiler_params=cparams,
            input_output_aliases={0: 0},
        )(x2, pe2)

    return out2.reshape(B, S, D)


if __name__ == "__main__":
    # Small shapes consistent with the module: batch=2, seq=8, d_model=32.
    d_model = 32
    seq_len = 8
    batch = 2
    dropout_p = 0.1

    key = jax.random.PRNGKey(0)
    kx, kd = jax.random.split(key)
    x = jax.random.normal(kx, (batch, seq_len, d_model), dtype=jnp.float32)
    pe = build_sinusoidal_pe(seq_len, d_model)
    ref = x + pe[:, :seq_len, :]

    # Eval-mode (dropout disabled): deterministic correctness check.
    out_eval = jax.block_until_ready(
        positional_encoding_forward(x, pe, dropout_p=0.0)
    )
    assert out_eval.shape == x.shape and out_eval.dtype == x.dtype
    assert jnp.allclose(out_eval, ref, atol=1e-5), "mismatch vs reference add"

    # Training-mode forward (add + dropout) through the fused kernel.
    out_train = jax.block_until_ready(
        positional_encoding_forward(x, pe, dropout_p=dropout_p, rng_key=kd)
    )
    assert out_train.shape == x.shape and out_train.dtype == x.dtype
    # Kept elements must equal (x + pe) / keep_prob; dropped elements are 0.
    keep_prob = 1.0 - dropout_p
    kept = out_train != 0.0
    assert jnp.allclose(
        jnp.where(kept, out_train, 0.0),
        jnp.where(kept, ref / keep_prob, 0.0),
        atol=1e-5,
    ), "dropout scaling mismatch"

    print("KERNEL_OK")
</pallas_src>

<mosaic_0001>
module attributes {stable_mosaic.version = 11 : i64} {
  func.func @_pe_add_kernel(%arg0: i32, %arg1: i32, %arg2: memref<2x2x128xf32, #tpu.memory_space<vmem>>, %arg3: memref<2x128xf32, #tpu.memory_space<vmem>>, %arg4: memref<2x2x128xf32, #tpu.memory_space<vmem>>) attributes {dimension_semantics = [#tpu.dimension_semantics<parallel>, #tpu.dimension_semantics<parallel>], iteration_bounds = array<i64: 1, 1>, scalar_prefetch = 0 : i64, scratch_operands = 0 : i64, tpu.core_type = #tpu.core_type<tc>, window_params = [{transform_indices = @transform_0, window_bounds = array<i64: 2, 2, 128>}, {transform_indices = @transform_1, window_bounds = array<i64: 2, 128>}, {transform_indices = @transform_2, window_bounds = array<i64: 2, 2, 128>}]} {
    %c0 = arith.constant 0 : index
    %c0_0 = arith.constant 0 : index
    %c0_1 = arith.constant 0 : index
    %0 = vector.load %arg2[%c0, %c0_0, %c0_1] : memref<2x2x128xf32, #tpu.memory_space<vmem>>, vector<2x2x128xf32>
    %c0_2 = arith.constant 0 : index
    %c0_3 = arith.constant 0 : index
    %1 = vector.load %arg3[%c0_2, %c0_3] : memref<2x128xf32, #tpu.memory_space<vmem>>, vector<2x128xf32>
    %2 = vector.shape_cast %1 : vector<2x128xf32> to vector<1x2x128xf32>
    %3 = vector.broadcast %2 : vector<1x2x128xf32> to vector<2x2x128xf32>
    %4 = arith.addf %0, %3 : vector<2x2x128xf32>
    %c0_4 = arith.constant 0 : index
    %c0_5 = arith.constant 0 : index
    %c0_6 = arith.constant 0 : index
    %5 = vector.load %arg4[%c0_4, %c0_5, %c0_6] : memref<2x2x128xf32, #tpu.memory_space<vmem>>, vector<2x2x128xf32>
    tpu.vector_store %arg4[%c0_4, %c0_5, %c0_6], %4 {strides = array<i32>} : memref<2x2x128xf32, #tpu.memory_space<vmem>>, vector<2x2x128xf32>,
    return
  }
  func.func @transform_0(%arg0: i32, %arg1: i32) -> (i32, i32, i32) {
    %c0_i32 = arith.constant 0 : i32
    %c0_i32_0 = arith.constant 0 : i32
    return %arg1, %arg0, %c0_i32 : i32, i32, i32
  }
  func.func @transform_1(%arg0: i32, %arg1: i32) -> (i32, i32) {
    %c0_i32 = arith.constant 0 : i32
    %c0_i32_0 = arith.constant 0 : i32
    return %arg0, %c0_i32 : i32, i32
  }
  func.func @transform_2(%arg0: i32, %arg1: i32) -> (i32, i32, i32) {
    %c0_i32 = arith.constant 0 : i32
    %c0_i32_0 = arith.constant 0 : i32
    return %arg1, %arg0, %c0_i32 : i32, i32, i32
  }
}

</mosaic_0001>

<llo_original>
// kernel: tpu_custom_call.1
$region0: #{tpu_custom_call.1}
  #allocation0 [shape = 'u32[]', space=smem, size = 0x4, offset = 0x4, fixed_abs, tag = 'smem constant byte address 0x4 - core index']
  #allocation1 [shape = 'u32[72,128]{1,0:T(1,128)}', space=vmem, size = 0x9000, scoped, tag = 'internal scratch']
  %s0 = inlined_call_operand.hbm [shape: f32[2,2,128], index: 0, kind: input, shape index: {}, may-alias: {0,2}]
  %s1 = inlined_call_operand.vmem [shape: f32[2,128], index: 1, kind: input, shape index: {}]
  %s2 = inlined_call_operand.hbm [shape: f32[2,2,128], index: 2, kind: output, shape index: {}, may-alias: {0,2}]
  %s3 = sld [smem:[#allocation0]]
  $region22: #{tpu_custom_call.1} parent=0
    _
  %s5 = ssub.s32 1, %s3
  %s6 = scalar_select 0, %s5, %s3
  $region1: #{tpu_custom_call.1} parent=0
    #allocation2 [shape = 'u8[2048]{0}', space=vmem, size = 0x800, scoped, tag = 'input window, operand 0, single buffered']
    #allocation3 [shape = 's32[1]{0}', space=sflag, size = 0x4, scoped, tag = 'scoped memory for tpu_custom_call.1']
    #allocation4 [shape = 's32[1]{0}', space=sflag, size = 0x4, scoped, tag = 'scoped memory for tpu_custom_call.1']
    #allocation5 [shape = 'u8[2048]{0}', space=vmem, size = 0x800, scoped, tag = 'output window, operand 0, single buffered']
    %7 = vsyncpa [#allocation3], 0
    %8 = vsyncpa [#allocation4], 0
    // Predicated region
    $region2: #{tpu_custom_call.1} parent=1 // pred_check
      _
    $region3: #{tpu_custom_call.1} parent=1 // pred_check_branch
      %10 = sbr.rel (0) target = $region5
    $region4: #{tpu_custom_call.1} parent=1 // pred_region
      %12 = vsyncadd [#allocation3], 0
      %s13 = sshll.u32 %s0, 4
      %s14 = int_to_ptr.hbm [resolvable:$true] %s13
      %s15 = sshll.u32 [#allocation2], 4
      %s16 = int_to_ptr.vmem [resolvable:$true] %s15
      %21 = dma.hbm_to_vmem [thread:$0]  %s14, 64, %s16, [#allocation3], 32, 32, 2
    $region5: #{tpu_custom_call.1} parent=1 // pred_fallthru
      _
    // Predicated region
    $region6: #{tpu_custom_call.1} parent=1 // pred_check
      _
    $region7: #{tpu_custom_call.1} parent=1 // pred_check_branch
      %23 = sbr.rel (0) target = $region9
    $region8: #{tpu_custom_call.1} parent=1 // pred_region
      _
    $region9: #{tpu_custom_call.1} parent=1 // pred_fallthru
      _
    // Predicated region
    $region10: #{tpu_custom_call.1} parent=1 // pred_check
      _
    $region11: #{tpu_custom_call.1} parent=1 // pred_check_branch
      %25 = sbr.rel (0) target = $region13
    $region12: #{tpu_custom_call.1} parent=1 // pred_region
      %27 = dma.done [#allocation3], 64
    $region13: #{tpu_custom_call.1} parent=1 // pred_fallthru
      _
    %v28 = vld [vmem:[#allocation2] sm:$0x3]
    %v29 = vld [vmem:[#allocation2 + $0x2] sm:$0x3]
    %v30 = vld [vmem:[%s1] sm:$0x3]
    %v31 = vadd.f32 %v28, %v30
    %v32 = vadd.f32 %v29, %v30
    %33 = vst [vmem:[#allocation5] sm:$0x3] %v31
    %34 = vst [vmem:[#allocation5 + $0x2] sm:$0x3] %v32
    // Predicated region
    $region14: #{tpu_custom_call.1} parent=1 // pred_check
      _
    $region15: #{tpu_custom_call.1} parent=1 // pred_check_branch
      %36 = sbr.rel (0) target = $region17
    $region16: #{tpu_custom_call.1} parent=1 // pred_region
      %38 = vsyncadd [#allocation4], 0
      %s39 = sshll.u32 [#allocation5], 4
      %s40 = int_to_ptr.vmem [resolvable:$true] %s39
      %s41 = sshll.u32 %s2, 4
      %s42 = int_to_ptr.hbm [resolvable:$true] %s41
      %47 = dma.vmem_to_hbm [thread:$0]  %s40, 64, %s42, [#allocation4], 32, 32, 2
    $region17: #{tpu_custom_call.1} parent=1 // pred_fallthru
      _
    // Predicated region
    $region18: #{tpu_custom_call.1} parent=1 // pred_check
      _
    $region19: #{tpu_custom_call.1} parent=1 // pred_check_branch
      %49 = sbr.rel (0) target = $region21
    $region20: #{tpu_custom_call.1} parent=1 // pred_region
      %51 = dma.done [#allocation4], 64
    $region21: #{tpu_custom_call.1} parent=1 // pred_fallthru
      _
    %52 = vsyncpa [#allocation3], 1
    %53 = vsyncpa [#allocation4], 1

</llo_original>
